<compile_context>
chip_gen: v7x
topology: tpu7x:2x2x1
jax: 0.10.0
libtpu: 0.0.40
codegen_flags: <defaults>
</compile_context>

<pallas_src>
import functools

import jax
import jax.numpy as jnp
from jax.experimental import pallas as pl
from jax.experimental.pallas import tpu as pltpu


def _round_up(a, m):
    return ((a + m - 1) // m) * m


def _conv_decoder_output_kernel(xm_ref, xr_ref, wmu_ref, wrho_ref,
                                bmu_ref, brho_ref, mu_ref, sig_ref, *, Nb):
    # xm_ref  : (Nb, K*C,  Lm)  im2col'd (kernel-flipped) input for the ConvTranspose1d
    # xr_ref  : (Nb, Kr*C, Lr)  im2col'd input for the rho Conv1d
    # wmu_ref : (tm, K*C)       flattened ConvTranspose1d weight tile (O tile on sublanes)
    # wrho_ref: (tm, Kr*C)      flattened Conv1d (rho) weight tile
    # bmu_ref : (tm, 1)         biases
    # brho_ref: (tm, 1)
    # mu_ref  : (Nb, tm, Lm)    outputs already in PyTorch (N, O, L_out) orientation
    # sig_ref : (Nb, tm, Lr)
    wmu = wmu_ref[...]
    wrho = wrho_ref[...]
    bmu = bmu_ref[...]
    brho = brho_ref[...]
    # Small static loop over the batch rows of this block: each iteration is a single
    # deep-contraction MXU matmul per head (all conv taps folded into the contraction).
    for n in range(Nb):
        acc_mu = jnp.dot(wmu, xm_ref[n], preferred_element_type=jnp.float32)   # (tm, Lm)
        mu_ref[n] = (acc_mu + bmu).astype(mu_ref.dtype)

        z = jnp.dot(wrho, xr_ref[n], preferred_element_type=jnp.float32) + brho  # (tm, Lr)
        # numerically-stable softplus (matches torch.nn.Softplus) + 1e-10
        sig = jnp.maximum(z, 0.0) + jnp.log1p(jnp.exp(-jnp.abs(z))) + 1e-10
        sig_ref[n] = sig.astype(sig_ref.dtype)


def conv_decoder_output(x, wt, bmu, wr, brho, *, vmem_budget_bytes=16 << 20):
    """Forward of ConvDecoderOutput (stride=1, padding=0, bias=True).

    x    : (N, C, L)
    wt   : (C, O, K)   nn.ConvTranspose1d weight layout
    bmu  : (O,)
    wr   : (O, C, Kr)  nn.Conv1d weight layout (Kr == in_features in the module)
    brho : (O,)
    returns (mu (N, O, L+K-1), sigma (N, O, L-Kr+1)) like the PyTorch module.
    """
    N, C, L = x.shape
    Cw, O, K = wt.shape
    Ow, Cr, Kr = wr.shape
    assert Cw == C and Cr == C and Ow == O and L >= Kr
    Lm = L + K - 1                 # ConvTranspose1d output length (stride=1, padding=0)
    Lr = L - Kr + 1                # Conv1d (rho) output length
    KC, KrC = K * C, Kr * C

    # ---- wrapper-side im2col (no activation/output transposes needed anywhere).
    # ConvTranspose1d (stride=1, pad=0) == correlation with the k-flipped kernel on a
    # zero-halo-padded input:  mu[n,o,j] = sum_{c,k'} xp[n,c,j+k'] * wt[c,o,K-1-k'].
    xp = jnp.pad(x, ((0, 0), (0, 0), (K - 1, K - 1)))                         # (N, C, L+2(K-1))
    xim_mu = jnp.concatenate([xp[:, :, k:k + Lm] for k in range(K)], axis=1)   # (N, K*C, Lm)
    xim_rho = jnp.concatenate([x[:, :, k:k + Lr] for k in range(Kr)], axis=1)  # (N, Kr*C, Lr)

    # Flattened weights so each conv is ONE matmul with contraction K*C / Kr*C.
    # (Tiny relayouts; in production hoist them to parameter-load time.)
    wmu_flat = jnp.transpose(wt[:, :, ::-1], (2, 0, 1)).reshape(KC, O).T       # (O, K*C)
    wrho_flat = jnp.transpose(wr, (0, 2, 1)).reshape(O, KrC)                   # (O, Kr*C)
    bmu2 = bmu.reshape(O, 1)
    brho2 = brho.reshape(O, 1)

    # out_channels live on the sublane axis -> pad to a multiple of 8 only (sliced off after).
    O_pad = _round_up(O, 8)
    if O_pad != O:
        padO = O_pad - O
        wmu_flat = jnp.pad(wmu_flat, ((0, padO), (0, 0)))
        wrho_flat = jnp.pad(wrho_flat, ((0, padO), (0, 0)))
        bmu2 = jnp.pad(bmu2, ((0, padO), (0, 0)))
        brho2 = jnp.pad(brho2, ((0, padO), (0, 0)))

    # ---- tile selection under an explicit VMEM budget (v7x: 64 MiB phys / 32 MiB scoped).
    def block_bytes(nb, tm):
        def pad2(s0, s1):   # (8,128) VMEM tile padding
            return _round_up(max(s0, 1), 8) * _round_up(max(s1, 1), 128)
        elems = (nb * pad2(KC, Lm) + nb * pad2(KrC, Lr)             # inputs
                 + pad2(tm, KC) + pad2(tm, KrC) + 2 * pad2(tm, 1)   # weights + biases
                 + nb * pad2(tm, Lm) + nb * pad2(tm, Lr))           # outputs
        return 2 * 4 * elems                                        # f32, double-buffered

    cands = ([O_pad] if O_pad <= 512 else [])
    cands += [t for t in (512, 256, 128, 64, 32, 16, 8) if t < O_pad and O_pad % t == 0]
    tm_cands = list(dict.fromkeys(cands)) or [8]
    nb_cands = [d for d in (8, 4, 2, 1) if N % d == 0]

    tm, Nb = 8, 1
    done = False
    for t in tm_cands:
        for nb in nb_cands:
            if block_bytes(nb, t) <= vmem_budget_bytes:
                tm, Nb, done = t, nb, True
                break
        if done:
            break

    grid = (O_pad // tm, N // Nb)   # O-tile axis OUTER: each weight tile is DMA'd once
    vmem_limit = min(64 << 20, max(block_bytes(Nb, tm) + (4 << 20), 32 << 20))

    kernel = functools.partial(_conv_decoder_output_kernel, Nb=Nb)

    flops = 2 * N * O_pad * (KC * Lm + KrC * Lr)
    transc = 2 * N * O_pad * Lr
    bytes_accessed = 4 * (xim_mu.size + xim_rho.size + wmu_flat.size + wrho_flat.size
                          + bmu2.size + brho2.size + N * O_pad * Lm + N * O_pad * Lr)

    mu_out, sig_out = pl.pallas_call(
        kernel,
        out_shape=(jax.ShapeDtypeStruct((N, O_pad, Lm), x.dtype),
                   jax.ShapeDtypeStruct((N, O_pad, Lr), x.dtype)),
        grid_spec=pltpu.PrefetchScalarGridSpec(
            num_scalar_prefetch=0,
            grid=grid,
            in_specs=[
                pl.BlockSpec((Nb, KC, Lm), lambda j, b: (b, 0, 0)),    # im2col x (mu)
                pl.BlockSpec((Nb, KrC, Lr), lambda j, b: (b, 0, 0)),   # im2col x (rho)
                pl.BlockSpec((tm, KC), lambda j, b: (j, 0)),           # mu weight tile
                pl.BlockSpec((tm, KrC), lambda j, b: (j, 0)),          # rho weight tile
                pl.BlockSpec((tm, 1), lambda j, b: (j, 0)),            # mu bias tile
                pl.BlockSpec((tm, 1), lambda j, b: (j, 0)),            # rho bias tile
            ],
            out_specs=[
                pl.BlockSpec((Nb, tm, Lm), lambda j, b: (b, j, 0)),
                pl.BlockSpec((Nb, tm, Lr), lambda j, b: (b, j, 0)),
            ],
        ),
        compiler_params=pltpu.CompilerParams(
            dimension_semantics=("parallel", "parallel"),
            vmem_limit_bytes=vmem_limit),
        cost_estimate=pl.CostEstimate(
            flops=flops, transcendentals=transc, bytes_accessed=bytes_accessed),
    )(xim_mu, xim_rho, wmu_flat, wrho_flat, bmu2, brho2)

    if O_pad != O:
        mu_out = mu_out[:, :O, :]
        sig_out = sig_out[:, :O, :]
    return mu_out, sig_out


def ref_forward(x, wt, bmu, wr, brho):
    """Pure-JAX reference of the PyTorch forward (same conv math, independent path)."""
    N, C, L = x.shape
    O, K = wt.shape[1], wt.shape[2]
    Kr = wr.shape[2]
    Lm = L + K - 1
    Lr = L - Kr + 1
    # ConvTranspose1d: out[n,o,j] = sum_{c,k} x[n,c,j-k] * wt[c,o,k] + bmu[o]
    mu = jnp.zeros((N, O, Lm), jnp.float32)
    for k in range(K):
        contrib = jnp.einsum('ncl,co->nol', x, wt[:, :, k])
        mu = mu.at[:, :, k:k + L].add(contrib)
    mu = mu + bmu[None, :, None]
    # Conv1d (rho): z[n,o,j] = sum_{c,k} x[n,c,j+k] * wr[o,c,k] + brho[o]
    zs = [jnp.einsum('nck,ock->no', x[:, :, j:j + Kr], wr) for j in range(Lr)]
    z = jnp.stack(zs, axis=-1) + brho[None, :, None]
    sigma = jax.nn.softplus(z) + 1e-10
    return mu, sigma


if __name__ == "__main__":
    # Small shapes consistent with the module: x is (batch, in_channels, in_features).
    N, C, L = 2, 4, 16        # batch, in_channels, in_features (spatial size)
    O, K = 32, 3              # out_channels, ConvTranspose1d kernel_size (module default)
    Kr = L                    # rho Conv1d kernel_size = in_features (per module ctor)

    key = jax.random.PRNGKey(0)
    kx, k1, k2, k3, k4 = jax.random.split(key, 5)
    x = jax.random.normal(kx, (N, C, L), dtype=jnp.float32)

    b_mu = 1.0 / (C * K) ** 0.5
    wt = jax.random.uniform(k1, (C, O, K), minval=-b_mu, maxval=b_mu, dtype=jnp.float32)
    bmu = jax.random.uniform(k2, (O,), minval=-b_mu, maxval=b_mu, dtype=jnp.float32)
    b_rho = 1.0 / (C * Kr) ** 0.5
    wr = jax.random.uniform(k3, (O, C, Kr), minval=-b_rho, maxval=b_rho, dtype=jnp.float32)
    brho = jax.random.uniform(k4, (O,), minval=-b_rho, maxval=b_rho, dtype=jnp.float32)

    mu, sigma = jax.block_until_ready(conv_decoder_output(x, wt, bmu, wr, brho))

    mu_ref, sigma_ref = ref_forward(x, wt, bmu, wr, brho)
    assert mu.shape == (N, O, L + K - 1)
    assert sigma.shape == (N, O, L - Kr + 1)
    assert jnp.allclose(mu, mu_ref, atol=1e-3, rtol=1e-3)
    assert jnp.allclose(sigma, sigma_ref, atol=1e-3, rtol=1e-3)
    assert bool(jnp.all(sigma > 0))

    print("KERNEL_OK")
</pallas_src>

<mosaic_0001>
module attributes {stable_mosaic.version = 11 : i64} {
  func.func @_conv_decoder_output_kernel(%arg0: i32, %arg1: i32, %arg2: memref<2x12x18xf32, #tpu.memory_space<vmem>>, %arg3: memref<2x64x1xf32, #tpu.memory_space<vmem>>, %arg4: memref<32x12xf32, #tpu.memory_space<vmem>>, %arg5: memref<32x64xf32, #tpu.memory_space<vmem>>, %arg6: memref<32x1xf32, #tpu.memory_space<vmem>>, %arg7: memref<32x1xf32, #tpu.memory_space<vmem>>, %arg8: memref<2x32x18xf32, #tpu.memory_space<vmem>>, %arg9: memref<2x32x1xf32, #tpu.memory_space<vmem>>) attributes {dimension_semantics = [#tpu.dimension_semantics<parallel>, #tpu.dimension_semantics<parallel>], iteration_bounds = array<i64: 1, 1>, scalar_prefetch = 0 : i64, scratch_operands = 0 : i64, tpu.core_type = #tpu.core_type<tc>, window_params = [{transform_indices = @transform_0, window_bounds = array<i64: 2, 12, 18>}, {transform_indices = @transform_1, window_bounds = array<i64: 2, 64, 1>}, {transform_indices = @transform_2, window_bounds = array<i64: 32, 12>}, {transform_indices = @transform_3, window_bounds = array<i64: 32, 64>}, {transform_indices = @transform_4, window_bounds = array<i64: 32, 1>}, {transform_indices = @transform_5, window_bounds = array<i64: 32, 1>}, {transform_indices = @transform_6, window_bounds = array<i64: 2, 32, 18>}, {transform_indices = @transform_7, window_bounds = array<i64: 2, 32, 1>}]} {
    %c0 = arith.constant 0 : index
    %c0_0 = arith.constant 0 : index
    %0 = vector.load %arg4[%c0, %c0_0] : memref<32x12xf32, #tpu.memory_space<vmem>>, vector<32x12xf32>
    %c0_1 = arith.constant 0 : index
    %c0_2 = arith.constant 0 : index
    %1 = vector.load %arg5[%c0_1, %c0_2] : memref<32x64xf32, #tpu.memory_space<vmem>>, vector<32x64xf32>
    %c0_3 = arith.constant 0 : index
    %c0_4 = arith.constant 0 : index
    %2 = vector.load %arg6[%c0_3, %c0_4] : memref<32x1xf32, #tpu.memory_space<vmem>>, vector<32x1xf32>
    %c0_5 = arith.constant 0 : index
    %c0_6 = arith.constant 0 : index
    %3 = vector.load %arg7[%c0_5, %c0_6] : memref<32x1xf32, #tpu.memory_space<vmem>>, vector<32x1xf32>
    %c0_7 = arith.constant 0 : index
    %c0_8 = arith.constant 0 : index
    %c0_9 = arith.constant 0 : index
    %4 = vector.load %arg2[%c0_7, %c0_8, %c0_9] : memref<2x12x18xf32, #tpu.memory_space<vmem>>, vector<1x12x18xf32>
    %5 = vector.shape_cast %4 : vector<1x12x18xf32> to vector<12x18xf32>
    %cst = arith.constant dense<0.000000e+00> : vector<32x18xf32>
    %6 = tpu.matmul %0, %5, %cst {dimension_numbers = #tpu.dot_dimension_numbers<[1], [0], [0], [1], [0, 0, 1, 1], [], []>} : vector<32x12xf32>, vector<12x18xf32>, vector<32x18xf32> -> vector<32x18xf32>
    %7 = vector.broadcast %2 : vector<32x1xf32> to vector<32x18xf32>
    %8 = arith.addf %6, %7 : vector<32x18xf32>
    %c0_10 = arith.constant 0 : index
    %c0_11 = arith.constant 0 : index
    %c0_12 = arith.constant 0 : index
    %9 = vector.load %arg8[%c0_10, %c0_11, %c0_12] : memref<2x32x18xf32, #tpu.memory_space<vmem>>, vector<1x32x18xf32>
    %10 = vector.shape_cast %9 : vector<1x32x18xf32> to vector<32x18xf32>
    %11 = vector.shape_cast %8 : vector<32x18xf32> to vector<1x32x18xf32>
    tpu.vector_store %arg8[%c0_10, %c0_11, %c0_12], %11 {strides = array<i32>} : memref<2x32x18xf32, #tpu.memory_space<vmem>>, vector<1x32x18xf32>,
    %c0_13 = arith.constant 0 : index
    %c0_14 = arith.constant 0 : index
    %c0_15 = arith.constant 0 : index
    %12 = vector.load %arg3[%c0_13, %c0_14, %c0_15] : memref<2x64x1xf32, #tpu.memory_space<vmem>>, vector<1x64x1xf32>
    %13 = vector.shape_cast %12 : vector<1x64x1xf32> to vector<64x1xf32>
    %cst_16 = arith.constant dense<0.000000e+00> : vector<32x1xf32>
    %14 = tpu.matmul %1, %13, %cst_16 {dimension_numbers = #tpu.dot_dimension_numbers<[1], [0], [0], [1], [0, 0, 1, 1], [], []>} : vector<32x64xf32>, vector<64x1xf32>, vector<32x1xf32> -> vector<32x1xf32>
    %15 = arith.addf %14, %3 : vector<32x1xf32>
    %cst_17 = arith.constant 0.000000e+00 : f32
    %16 = vector.broadcast %cst_17 : f32 to vector<32x1xf32>
    %17 = arith.maximumf %15, %16 : vector<32x1xf32>
    %18 = math.absf %15 : vector<32x1xf32>
    %cst_18 = arith.constant 0.000000e+00 : f32
    %19 = vector.broadcast %cst_18 : f32 to vector<32x1xf32>
    %20 = arith.subf %19, %18 : vector<32x1xf32>
    %21 = math.exp %20 : vector<32x1xf32>
    %22 = math.log1p %21 : vector<32x1xf32>
    %23 = arith.addf %17, %22 : vector<32x1xf32>
    %cst_19 = arith.constant 1.000000e-10 : f32
    %24 = vector.broadcast %cst_19 : f32 to vector<32x1xf32>
    %25 = arith.addf %23, %24 : vector<32x1xf32>
    %c0_20 = arith.constant 0 : index
    %c0_21 = arith.constant 0 : index
    %c0_22 = arith.constant 0 : index
    %26 = vector.load %arg9[%c0_20, %c0_21, %c0_22] : memref<2x32x1xf32, #tpu.memory_space<vmem>>, vector<1x32x1xf32>
    %27 = vector.shape_cast %26 : vector<1x32x1xf32> to vector<32x1xf32>
    %28 = vector.shape_cast %25 : vector<32x1xf32> to vector<1x32x1xf32>
    tpu.vector_store %arg9[%c0_20, %c0_21, %c0_22], %28 {strides = array<i32>} : memref<2x32x1xf32, #tpu.memory_space<vmem>>, vector<1x32x1xf32>,
    %c1 = arith.constant 1 : index
    %c0_23 = arith.constant 0 : index
    %c0_24 = arith.constant 0 : index
    %29 = vector.load %arg2[%c1, %c0_23, %c0_24] : memref<2x12x18xf32, #tpu.memory_space<vmem>>, vector<1x12x18xf32>
    %30 = vector.shape_cast %29 : vector<1x12x18xf32> to vector<12x18xf32>
    %cst_25 = arith.constant dense<0.000000e+00> : vector<32x18xf32>
    %31 = tpu.matmul %0, %30, %cst_25 {dimension_numbers = #tpu.dot_dimension_numbers<[1], [0], [0], [1], [0, 0, 1, 1], [], []>} : vector<32x12xf32>, vector<12x18xf32>, vector<32x18xf32> -> vector<32x18xf32>
    %32 = vector.broadcast %2 : vector<32x1xf32> to vector<32x18xf32>
    %33 = arith.addf %31, %32 : vector<32x18xf32>
    %c1_26 = arith.constant 1 : index
    %c0_27 = arith.constant 0 : index
    %c0_28 = arith.constant 0 : index
    %34 = vector.load %arg8[%c1_26, %c0_27, %c0_28] : memref<2x32x18xf32, #tpu.memory_space<vmem>>, vector<1x32x18xf32>
    %35 = vector.shape_cast %34 : vector<1x32x18xf32> to vector<32x18xf32>
    %36 = vector.shape_cast %33 : vector<32x18xf32> to vector<1x32x18xf32>
    tpu.vector_store %arg8[%c1_26, %c0_27, %c0_28], %36 {strides = array<i32>} : memref<2x32x18xf32, #tpu.memory_space<vmem>>, vector<1x32x18xf32>,
    %c1_29 = arith.constant 1 : index
    %c0_30 = arith.constant 0 : index
    %c0_31 = arith.constant 0 : index
    %37 = vector.load %arg3[%c1_29, %c0_30, %c0_31] : memref<2x64x1xf32, #tpu.memory_space<vmem>>, vector<1x64x1xf32>
    %38 = vector.shape_cast %37 : vector<1x64x1xf32> to vector<64x1xf32>
    %cst_32 = arith.constant dense<0.000000e+00> : vector<32x1xf32>
    %39 = tpu.matmul %1, %38, %cst_32 {dimension_numbers = #tpu.dot_dimension_numbers<[1], [0], [0], [1], [0, 0, 1, 1], [], []>} : vector<32x64xf32>, vector<64x1xf32>, vector<32x1xf32> -> vector<32x1xf32>
    %40 = arith.addf %39, %3 : vector<32x1xf32>
    %cst_33 = arith.constant 0.000000e+00 : f32
    %41 = vector.broadcast %cst_33 : f32 to vector<32x1xf32>
    %42 = arith.maximumf %40, %41 : vector<32x1xf32>
    %43 = math.absf %40 : vector<32x1xf32>
    %cst_34 = arith.constant 0.000000e+00 : f32
    %44 = vector.broadcast %cst_34 : f32 to vector<32x1xf32>
    %45 = arith.subf %44, %43 : vector<32x1xf32>
    %46 = math.exp %45 : vector<32x1xf32>
    %47 = math.log1p %46 : vector<32x1xf32>
    %48 = arith.addf %42, %47 : vector<32x1xf32>
    %cst_35 = arith.constant 1.000000e-10 : f32
    %49 = vector.broadcast %cst_35 : f32 to vector<32x1xf32>
    %50 = arith.addf %48, %49 : vector<32x1xf32>
    %c1_36 = arith.constant 1 : index
    %c0_37 = arith.constant 0 : index
    %c0_38 = arith.constant 0 : index
    %51 = vector.load %arg9[%c1_36, %c0_37, %c0_38] : memref<2x32x1xf32, #tpu.memory_space<vmem>>, vector<1x32x1xf32>
    %52 = vector.shape_cast %51 : vector<1x32x1xf32> to vector<32x1xf32>
    %53 = vector.shape_cast %50 : vector<32x1xf32> to vector<1x32x1xf32>
    tpu.vector_store %arg9[%c1_36, %c0_37, %c0_38], %53 {strides = array<i32>} : memref<2x32x1xf32, #tpu.memory_space<vmem>>, vector<1x32x1xf32>,
    return
  }
  func.func @transform_0(%arg0: i32, %arg1: i32) -> (i32, i32, i32) {
    %c0_i32 = arith.constant 0 : i32
    %c0_i32_0 = arith.constant 0 : i32
    %c0_i32_1 = arith.constant 0 : i32
    return %arg1, %c0_i32, %c0_i32_0 : i32, i32, i32
  }
  func.func @transform_1(%arg0: i32, %arg1: i32) -> (i32, i32, i32) {
    %c0_i32 = arith.constant 0 : i32
    %c0_i32_0 = arith.constant 0 : i32
    %c0_i32_1 = arith.constant 0 : i32
    return %arg1, %c0_i32, %c0_i32_0 : i32, i32, i32
  }
  func.func @transform_2(%arg0: i32, %arg1: i32) -> (i32, i32) {
    %c0_i32 = arith.constant 0 : i32
    %c0_i32_0 = arith.constant 0 : i32
    return %arg0, %c0_i32 : i32, i32
  }
  func.func @transform_3(%arg0: i32, %arg1: i32) -> (i32, i32) {
    %c0_i32 = arith.constant 0 : i32
    %c0_i32_0 = arith.constant 0 : i32
    return %arg0, %c0_i32 : i32, i32
  }
  func.func @transform_4(%arg0: i32, %arg1: i32) -> (i32, i32) {
    %c0_i32 = arith.constant 0 : i32
    %c0_i32_0 = arith.constant 0 : i32
    return %arg0, %c0_i32 : i32, i32
  }
  func.func @transform_5(%arg0: i32, %arg1: i32) -> (i32, i32) {
    %c0_i32 = arith.constant 0 : i32
    %c0_i32_0 = arith.constant 0 : i32
    return %arg0, %c0_i32 : i32, i32
  }
  func.func @transform_6(%arg0: i32, %arg1: i32) -> (i32, i32, i32) {
    %c0_i32 = arith.constant 0 : i32
    %c0_i32_0 = arith.constant 0 : i32
    return %arg1, %arg0, %c0_i32 : i32, i32, i32
  }
  func.func @transform_7(%arg0: i32, %arg1: i32) -> (i32, i32, i32) {
    %c0_i32 = arith.constant 0 : i32
    %c0_i32_0 = arith.constant 0 : i32
    return %arg1, %arg0, %c0_i32 : i32, i32, i32
  }
}

</mosaic_0001>

<llo_original>
// kernel: tpu_custom_call.1
$region0: #{tpu_custom_call.1}
  #allocation0 [shape = 'u32[]', space=smem, size = 0x4, offset = 0x4, fixed_abs, tag = 'smem constant byte address 0x4 - core index']
  #allocation1 [shape = 'u32[144,128]{1,0:T(1,128)}', space=vmem, size = 0x12000, scoped, tag = 'internal scratch']
  %s0 = inlined_call_operand.vmem [shape: f32[2,12,18], index: 0, kind: input, shape index: {}]
  %s1 = inlined_call_operand.vmem [shape: f32[2,64,1], index: 1, kind: input, shape index: {}]
  %s2 = inlined_call_operand.vmem [shape: f32[32,12], index: 2, kind: input, shape index: {}]
  %s3 = inlined_call_operand.vmem [shape: f32[32,64], index: 3, kind: input, shape index: {}]
  %s4 = inlined_call_operand.vmem [shape: f32[32,1], index: 4, kind: input, shape index: {}]
  %s5 = inlined_call_operand.vmem [shape: f32[32,1], index: 5, kind: input, shape index: {}]
  %s6 = inlined_call_operand.vmem [shape: f32[2,32,18], index: 6, kind: output, shape index: {0}]
  %s7 = inlined_call_operand.vmem [shape: f32[2,32,1], index: 7, kind: output, shape index: {1}]
  %8 = xla_tuple %s6, %s7
  %s9 = sld [smem:[#allocation0]]
  $region42: #{tpu_custom_call.1} parent=0
    _
  %s11 = ssub.s32 1, %s9
  %s12 = scalar_select 0, %s11, %s9
  // Predicated region
  $region2: #{tpu_custom_call.1} parent=0 // pred_check
    _
  $region3: #{tpu_custom_call.1} parent=0 // pred_check_branch
    %14 = sbr.rel (0) target = $region5
  $region4: #{tpu_custom_call.1} parent=0 // pred_region
    _
  $region5: #{tpu_custom_call.1} parent=0 // pred_fallthru
    _
  // Predicated region
  $region6: #{tpu_custom_call.1} parent=0 // pred_check
    _
  $region7: #{tpu_custom_call.1} parent=0 // pred_check_branch
    %16 = sbr.rel (0) target = $region9
  $region8: #{tpu_custom_call.1} parent=0 // pred_region
    _
  $region9: #{tpu_custom_call.1} parent=0 // pred_fallthru
    _
  // Predicated region
  $region10: #{tpu_custom_call.1} parent=0 // pred_check
    _
  $region11: #{tpu_custom_call.1} parent=0 // pred_check_branch
    %18 = sbr.rel (0) target = $region13
  $region12: #{tpu_custom_call.1} parent=0 // pred_region
    _
  $region13: #{tpu_custom_call.1} parent=0 // pred_fallthru
    _
  // Predicated region
  $region14: #{tpu_custom_call.1} parent=0 // pred_check
    _
  $region15: #{tpu_custom_call.1} parent=0 // pred_check_branch
    %20 = sbr.rel (0) target = $region17
  $region16: #{tpu_custom_call.1} parent=0 // pred_region
    _
  $region17: #{tpu_custom_call.1} parent=0 // pred_fallthru
    _
  // Predicated region
  $region18: #{tpu_custom_call.1} parent=0 // pred_check
    _
  $region19: #{tpu_custom_call.1} parent=0 // pred_check_branch
    %22 = sbr.rel (0) target = $region21
  $region20: #{tpu_custom_call.1} parent=0 // pred_region
    _
  $region21: #{tpu_custom_call.1} parent=0 // pred_fallthru
    _
  // Predicated region
  $region22: #{tpu_custom_call.1} parent=0 // pred_check
    _
  $region23: #{tpu_custom_call.1} parent=0 // pred_check_branch
    %24 = sbr.rel (0) target = $region25
  $region24: #{tpu_custom_call.1} parent=0 // pred_region
    _
  $region25: #{tpu_custom_call.1} parent=0 // pred_fallthru
    _
  %v25 = vld [vmem:[%s2] sm:$0xff]
  %v26 = vld [vmem:[%s2 + $0x8] sm:$0xff]
  %v27 = vld [vmem:[%s2 + $0x10] sm:$0xff]
  %v28 = vld [vmem:[%s2 + $0x18] sm:$0xff]
  %v29 = vld [vmem:[%s3] sm:$0xff]
  %v30 = vld [vmem:[%s3 + $0x8] sm:$0xff]
  %v31 = vld [vmem:[%s3 + $0x10] sm:$0xff]
  %v32 = vld [vmem:[%s3 + $0x18] sm:$0xff]
  %v33 = vld [vmem:[%s4] sm:$0xff]
  %v34 = vld [vmem:[%s4 + $0x8] sm:$0xff]
  %v35 = vld [vmem:[%s4 + $0x10] sm:$0xff]
  %v36 = vld [vmem:[%s4 + $0x18] sm:$0xff]
  %v37 = vld [vmem:[%s5] sm:$0xff]
  %v38 = vld [vmem:[%s5 + $0x8] sm:$0xff]
  %v39 = vld [vmem:[%s5 + $0x10] sm:$0xff]
  %v40 = vld [vmem:[%s5 + $0x18] sm:$0xff]
  %v41 = vld [vmem:[%s0] sm:$0xff]
  %v42 = vld [vmem:[%s0 + $0x8] sm:$0xf]
  %44 = vset.pattern.permute.xlu0 0
  %45 = vperm.xlu0 %44, %v33
  %v46 = vpop.permute.xlu0 %45
  %49 = vset.pattern.permute.xlu0 0
  %50 = vperm.xlu0 %49, %v34
  %v51 = vpop.permute.xlu0 %50
  %54 = vset.pattern.permute.xlu0 0
  %55 = vperm.xlu0 %54, %v35
  %v56 = vpop.permute.xlu0 %55
  %59 = vset.pattern.permute.xlu0 0
  %60 = vperm.xlu0 %59, %v36
  %v61 = vpop.permute.xlu0 %60
  %vm63 = vcmask 97280
  %v65 = vsel %vm63, %v25, 0
  %v68 = vsel %vm63, %v26, 0
  %v71 = vsel %vm63, %v27, 0
  %v74 = vsel %vm63, %v28, 0
  %vm76 = vcmask 1043456
  %v78 = vsel %vm76, %v42, 0
  %80 = vmatprep.subr.mxu0 0.0
  %81 = vmatpush1.msra.mxu0 %v41
  %82 = vmatprep.subr.mxu0 0.0
  %83 = vmatpush1.msra.mxu0 %v78
  %84 = vmatprep.subr.mxu0 0.0
  %85 = vmatpush1.msra.mxu0 0.0
  %86 = vmatprep.subr.mxu0 0.0
  %87 = vmatpush1.msra.mxu0 0.0
  %88 = vmatprep.subr.mxu0 0.0
  %89 = vmatpush1.msra.mxu0 0.0
  %90 = vmatprep.subr.mxu0 0.0
  %91 = vmatpush1.msra.mxu0 0.0
  %92 = vmatprep.subr.mxu0 0.0
  %93 = vmatpush1.msra.mxu0 0.0
  %94 = vmatprep.subr.mxu0 0.0
  %95 = vmatpush1.msra.mxu0 0.0
  %96 = vmatprep.subr.mxu0 0.0
  %97 = vmatpush1.msra.mxu0 0.0
  %98 = vmatprep.subr.mxu0 0.0
  %99 = vmatpush1.msra.mxu0 0.0
  %100 = vmatprep.subr.mxu0 0.0
  %101 = vmatpush1.msra.mxu0 0.0
  %102 = vmatprep.subr.mxu0 0.0
  %103 = vmatpush1.msra.mxu0 0.0
  %104 = vmatprep.subr.mxu0 0.0
  %105 = vmatpush1.msra.mxu0 0.0
  %106 = vmatprep.subr.mxu0 0.0
  %107 = vmatpush1.msra.mxu0 0.0
  %108 = vmatprep.subr.mxu0 0.0
  %109 = vmatpush1.msra.mxu0 0.0
  %110 = vmatprep.subr.mxu0 0.0
  %111 = vmatpush1.msra.mxu0 0.0
  %112 = vmatprep.subr.mxu0 0.0
  %113 = vmatpush1.msra.mxu0 0.0
  %114 = vmatprep.subr.mxu0 0.0
  %115 = vmatpush1.msra.mxu0 0.0
  %116 = vmatprep.subr.mxu0 0.0
  %117 = vmatpush1.msra.mxu0 0.0
  %118 = vmatprep.subr.mxu0 0.0
  %119 = vmatpush1.msra.mxu0 0.0
  %120 = vmatprep.subr.mxu0 0.0
  %121 = vmatpush1.msra.mxu0 0.0
  %122 = vmatprep.subr.mxu0 0.0
  %123 = vmatpush1.msra.mxu0 0.0
  %124 = vmatprep.subr.mxu0 0.0
  %125 = vmatpush1.msra.mxu0 0.0
  %126 = vmatprep.subr.mxu0 0.0
  %127 = vmatpush1.msra.mxu0 0.0
  %128 = vmatprep.subr.mxu0 0.0
  %129 = vmatpush1.msra.mxu0 0.0
  %130 = vmatprep.subr.mxu0 0.0
  %131 = vmatpush1.msra.mxu0 0.0
  %132 = vmatprep.subr.mxu0 0.0
  %133 = vmatpush1.msra.mxu0 0.0
  %134 = vmatprep.subr.mxu0 0.0
  %135 = vmatpush1.msra.mxu0 0.0
  %136 = vmatprep.subr.mxu0 0.0
  %137 = vmatpush1.msra.mxu0 0.0
  %138 = vmatprep.subr.mxu0 0.0
  %139 = vmatpush1.msra.mxu0 0.0
  %140 = vmatprep.subr.mxu0 0.0
  %141 = vmatpush1.msra.mxu0 0.0
  %142 = vmatprep.subr.mxu0 0.0
  %143 = vmatpush1.msra.mxu0 0.0
  %144 = vmatprep.mubr.f32.mxu0 0.0
  %145 = vmatmul.mubr.f32.gmra.mrb[0].mxu0 %v65
  %v146 = vpop.f32.mrb[0].mxu0
  %v147 = vadd.f32 %v46, %v146
  %v148 = vpop.f32.mrb[0].mxu0
  %149 = vmatprep.mubr.f32.mxu0 0.0
  %150 = vmatmul.mubr.f32.gmra.mrb[0].mxu0 %v68
  %v151 = vpop.f32.mrb[0].mxu0
  %v152 = vadd.f32 %v51, %v151
  %v153 = vpop.f32.mrb[0].mxu0
  %154 = vmatprep.mubr.f32.mxu0 0.0
  %155 = vmatmul.mubr.f32.gmra.mrb[0].mxu0 %v71
  %v156 = vpop.f32.mrb[0].mxu0
  %v157 = vadd.f32 %v56, %v156
  %v158 = vpop.f32.mrb[0].mxu0
  %159 = vmatprep.mubr.f32.mxu0 0.0
  %160 = vmatmul.mubr.f32.gmra.mrb[0].mxu0 %v74
  %v161 = vpop.f32.mrb[0].mxu0
  %v162 = vadd.f32 %v61, %v161
  %v163 = vpop.f32.mrb[0].mxu0
  %164 = vdwg.mxu0
  %vm165 = vcmask 146432
  %166 = vst.msk [vmem:[%s6] sm:$0xff] %vm165, %v147
  %167 = vst.msk [vmem:[%s6 + $0x8] sm:$0xff] %vm165, %v152
  %168 = vst.msk [vmem:[%s6 + $0x10] sm:$0xff] %vm165, %v157
  %169 = vst.msk [vmem:[%s6 + $0x18] sm:$0xff] %vm165, %v162
  %v170 = vld [vmem:[%s1] sm:$0xff]
  %v171 = vld [vmem:[%s1 + $0x8] sm:$0xff]
  %v172 = vld [vmem:[%s1 + $0x10] sm:$0xff]
  %v173 = vld [vmem:[%s1 + $0x18] sm:$0xff]
  %v174 = vld [vmem:[%s1 + $0x20] sm:$0xff]
  %v175 = vld [vmem:[%s1 + $0x28] sm:$0xff]
  %v176 = vld [vmem:[%s1 + $0x30] sm:$0xff]
  %v177 = vld [vmem:[%s1 + $0x38] sm:$0xff]
  %vm178 = vcmask 523264
  %v180 = vsel %vm178, %v29, 0
  %v183 = vsel %vm178, %v30, 0
  %v186 = vsel %vm178, %v31, 0
  %v189 = vsel %vm178, %v32, 0
  %191 = vmatprep.subr.mxu0 0.0
  %192 = vmatpush1.msra.mxu0 %v170
  %193 = vmatprep.subr.mxu0 0.0
  %194 = vmatpush1.msra.mxu0 %v171
  %195 = vmatprep.subr.mxu0 0.0
  %196 = vmatpush1.msra.mxu0 %v172
  %197 = vmatprep.subr.mxu0 0.0
  %198 = vmatpush1.msra.mxu0 %v173
  %199 = vmatprep.subr.mxu0 0.0
  %200 = vmatpush1.msra.mxu0 %v174
  %201 = vmatprep.subr.mxu0 0.0
  %202 = vmatpush1.msra.mxu0 %v175
  %203 = vmatprep.subr.mxu0 0.0
  %204 = vmatpush1.msra.mxu0 %v176
  %205 = vmatprep.subr.mxu0 0.0
  %206 = vmatpush1.msra.mxu0 %v177
  %207 = vmatprep.subr.mxu0 0.0
  %208 = vmatpush1.msra.mxu0 0.0
  %209 = vmatprep.subr.mxu0 0.0
  %210 = vmatpush1.msra.mxu0 0.0
  %211 = vmatprep.subr.mxu0 0.0
  %212 = vmatpush1.msra.mxu0 0.0
  %213 = vmatprep.subr.mxu0 0.0
  %214 = vmatpush1.msra.mxu0 0.0
  %215 = vmatprep.subr.mxu0 0.0
  %216 = vmatpush1.msra.mxu0 0.0
  %217 = vmatprep.subr.mxu0 0.0
  %218 = vmatpush1.msra.mxu0 0.0
  %219 = vmatprep.subr.mxu0 0.0
  %220 = vmatpush1.msra.mxu0 0.0
  %221 = vmatprep.subr.mxu0 0.0
  %222 = vmatpush1.msra.mxu0 0.0
  %223 = vmatprep.subr.mxu0 0.0
  %224 = vmatpush1.msra.mxu0 0.0
  %225 = vmatprep.subr.mxu0 0.0
  %226 = vmatpush1.msra.mxu0 0.0
  %227 = vmatprep.subr.mxu0 0.0
  %228 = vmatpush1.msra.mxu0 0.0
  %229 = vmatprep.subr.mxu0 0.0
  %230 = vmatpush1.msra.mxu0 0.0
  %231 = vmatprep.subr.mxu0 0.0
  %232 = vmatpush1.msra.mxu0 0.0
  %233 = vmatprep.subr.mxu0 0.0
  %234 = vmatpush1.msra.mxu0 0.0
  %235 = vmatprep.subr.mxu0 0.0
  %236 = vmatpush1.msra.mxu0 0.0
  %237 = vmatprep.subr.mxu0 0.0
  %238 = vmatpush1.msra.mxu0 0.0
  %239 = vmatprep.subr.mxu0 0.0
  %240 = vmatpush1.msra.mxu0 0.0
  %241 = vmatprep.subr.mxu0 0.0
  %242 = vmatpush1.msra.mxu0 0.0
  %243 = vmatprep.subr.mxu0 0.0
  %244 = vmatpush1.msra.mxu0 0.0
  %245 = vmatprep.subr.mxu0 0.0
  %246 = vmatpush1.msra.mxu0 0.0
  %247 = vmatprep.subr.mxu0 0.0
  %248 = vmatpush1.msra.mxu0 0.0
  %249 = vmatprep.subr.mxu0 0.0
  %250 = vmatpush1.msra.mxu0 0.0
  %251 = vmatprep.subr.mxu0 0.0
  %252 = vmatpush1.msra.mxu0 0.0
  %253 = vmatprep.subr.mxu0 0.0
  %254 = vmatpush1.msra.mxu0 0.0
  %255 = vmatprep.mubr.f32.mxu0 0.0
  %256 = vmatmul.mubr.f32.gmra.mrb[0].mxu0 %v180
  %v257 = vpop.f32.mrb[0].mxu0
  %v258 = vadd.f32 %v37, %v257
  %v259 = vpop.f32.mrb[0].mxu0
  %260 = vmatprep.mubr.f32.mxu0 0.0
  %261 = vmatmul.mubr.f32.gmra.mrb[0].mxu0 %v183
  %v262 = vpop.f32.mrb[0].mxu0
  %v263 = vadd.f32 %v38, %v262
  %v264 = vpop.f32.mrb[0].mxu0
  %265 = vmatprep.mubr.f32.mxu0 0.0
  %266 = vmatmul.mubr.f32.gmra.mrb[0].mxu0 %v186
  %v267 = vpop.f32.mrb[0].mxu0
  %v268 = vadd.f32 %v39, %v267
  %v269 = vpop.f32.mrb[0].mxu0
  %270 = vmatprep.mubr.f32.mxu0 0.0
  %271 = vmatmul.mubr.f32.gmra.mrb[0].mxu0 %v189
  %v272 = vpop.f32.mrb[0].mxu0
  %v273 = vadd.f32 %v40, %v272
  %v274 = vpop.f32.mrb[0].mxu0
  %275 = vdwg.mxu0
  %v276 = vmax.f32 %v258, 0.0
  %v277 = vmax.f32 %v263, 0.0
  %v278 = vmax.f32 %v268, 0.0
  %v279 = vmax.f32 %v273, 0.0
  %v280 = vand.u32 2147483647, %v258
  %v281 = vand.u32 2147483647, %v263
  %v282 = vand.u32 2147483647, %v268
  %v283 = vand.u32 2147483647, %v273
  %v284 = vsub.f32 0.0, %v280
  %v285 = vsub.f32 0.0, %v281
  %v286 = vsub.f32 0.0, %v282
  %v287 = vsub.f32 0.0, %v283
  %v288 = vmul.f32 %v284, 1.442695
  %v289 = vpow.pop %v288
  %v290 = vmul.f32 %v285, 1.442695
  %v291 = vpow.pop %v290
  %v292 = vmul.f32 %v286, 1.442695
  %v293 = vpow.pop %v292
  %v294 = vmul.f32 %v287, 1.442695
  %v295 = vpow.pop %v294
  %v296 = vadd.f32 %v289, 1.0
  %v297 = vlog2.pop %v296
  %v298 = vmul.f32 %v297, 0.6931472
  %v299 = vmul.f32 -0.5, %v289
  %v300 = vadd.f32 %v299, 1.0
  %v301 = vmul.f32 %v300, %v289
  %v302 = vand.u32 2147483647, %v289
  %vm303 = vcmp.lt.f32.partialorder %v302, 0.0004427343
  %v304 = vsel %vm303, %v301, %v298
  %v305 = vadd.f32 %v291, 1.0
  %v306 = vlog2.pop %v305
  %v307 = vmul.f32 %v306, 0.6931472
  %v308 = vmul.f32 -0.5, %v291
  %v309 = vadd.f32 %v308, 1.0
  %v310 = vmul.f32 %v309, %v291
  %v311 = vand.u32 2147483647, %v291
  %vm312 = vcmp.lt.f32.partialorder %v311, 0.0004427343
  %v313 = vsel %vm312, %v310, %v307
  %v314 = vadd.f32 %v293, 1.0
  %v315 = vlog2.pop %v314
  %v316 = vmul.f32 %v315, 0.6931472
  %v317 = vmul.f32 -0.5, %v293
  %v318 = vadd.f32 %v317, 1.0
  %v319 = vmul.f32 %v318, %v293
  %v320 = vand.u32 2147483647, %v293
  %vm321 = vcmp.lt.f32.partialorder %v320, 0.0004427343
  %v322 = vsel %vm321, %v319, %v316
  %v323 = vadd.f32 %v295, 1.0
  %v324 = vlog2.pop %v323
  %v325 = vmul.f32 %v324, 0.6931472
  %v326 = vmul.f32 -0.5, %v295
  %v327 = vadd.f32 %v326, 1.0
  %v328 = vmul.f32 %v327, %v295
  %v329 = vand.u32 2147483647, %v295
  %vm330 = vcmp.lt.f32.partialorder %v329, 0.0004427343
  %v331 = vsel %vm330, %v328, %v325
  %v332 = vadd.f32 %v276, %v304
  %v333 = vadd.f32 %v277, %v313
  %v334 = vadd.f32 %v278, %v322
  %v335 = vadd.f32 %v279, %v331
  %v336 = vadd.f32 %v332, 1e-10
  %v337 = vadd.f32 %v333, 1e-10
  %v338 = vadd.f32 %v334, 1e-10
  %v339 = vadd.f32 %v335, 1e-10
  %vm340 = vcmask 7168
  %341 = vst.msk [vmem:[%s7] sm:$0xff] %vm340, %v336
  %342 = vst.msk [vmem:[%s7 + $0x8] sm:$0xff] %vm340, %v337
  %343 = vst.msk [vmem:[%s7 + $0x10] sm:$0xff] %vm340, %v338
  %344 = vst.msk [vmem:[%s7 + $0x18] sm:$0xff] %vm340, %v339
  %s345 = scalar_lea.vmem %s0, 16
  %v346 = vld [vmem:[%s345] sm:$0xff]
  %v347 = vld [vmem:[%s345 + $0x8] sm:$0xf]
  %v349 = vsel %vm76, %v347, 0
  %351 = vmatprep.subr.mxu0 0.0
  %352 = vmatpush1.msra.mxu0 %v346
  %353 = vmatprep.subr.mxu0 0.0
  %354 = vmatpush1.msra.mxu0 %v349
  %355 = vmatprep.subr.mxu0 0.0
  %356 = vmatpush1.msra.mxu0 0.0
  %357 = vmatprep.subr.mxu0 0.0
  %358 = vmatpush1.msra.mxu0 0.0
  %359 = vmatprep.subr.mxu0 0.0
  %360 = vmatpush1.msra.mxu0 0.0
  %361 = vmatprep.subr.mxu0 0.0
  %362 = vmatpush1.msra.mxu0 0.0
  %363 = vmatprep.subr.mxu0 0.0
  %364 = vmatpush1.msra.mxu0 0.0
  %365 = vmatprep.subr.mxu0 0.0
  %366 = vmatpush1.msra.mxu0 0.0
  %367 = vmatprep.subr.mxu0 0.0
  %368 = vmatpush1.msra.mxu0 0.0
  %369 = vmatprep.subr.mxu0 0.0
  %370 = vmatpush1.msra.mxu0 0.0
  %371 = vmatprep.subr.mxu0 0.0
  %372 = vmatpush1.msra.mxu0 0.0
  %373 = vmatprep.subr.mxu0 0.0
  %374 = vmatpush1.msra.mxu0 0.0
  %375 = vmatprep.subr.mxu0 0.0
  %376 = vmatpush1.msra.mxu0 0.0
  %377 = vmatprep.subr.mxu0 0.0
  %378 = vmatpush1.msra.mxu0 0.0
  %379 = vmatprep.subr.mxu0 0.0
  %380 = vmatpush1.msra.mxu0 0.0
  %381 = vmatprep.subr.mxu0 0.0
  %382 = vmatpush1.msra.mxu0 0.0
  %383 = vmatprep.subr.mxu0 0.0
  %384 = vmatpush1.msra.mxu0 0.0
  %385 = vmatprep.subr.mxu0 0.0
  %386 = vmatpush1.msra.mxu0 0.0
  %387 = vmatprep.subr.mxu0 0.0
  %388 = vmatpush1.msra.mxu0 0.0
  %389 = vmatprep.subr.mxu0 0.0
  %390 = vmatpush1.msra.mxu0 0.0
  %391 = vmatprep.subr.mxu0 0.0
  %392 = vmatpush1.msra.mxu0 0.0
  %393 = vmatprep.subr.mxu0 0.0
  %394 = vmatpush1.msra.mxu0 0.0
  %395 = vmatprep.subr.mxu0 0.0
  %396 = vmatpush1.msra.mxu0 0.0
  %397 = vmatprep.subr.mxu0 0.0
  %398 = vmatpush1.msra.mxu0 0.0
  %399 = vmatprep.subr.mxu0 0.0
  %400 = vmatpush1.msra.mxu0 0.0
  %401 = vmatprep.subr.mxu0 0.0
  %402 = vmatpush1.msra.mxu0 0.0
  %403 = vmatprep.subr.mxu0 0.0
  %404 = vmatpush1.msra.mxu0 0.0
  %405 = vmatprep.subr.mxu0 0.0
  %406 = vmatpush1.msra.mxu0 0.0
  %407 = vmatprep.subr.mxu0 0.0
  %408 = vmatpush1.msra.mxu0 0.0
  %409 = vmatprep.subr.mxu0 0.0
  %410 = vmatpush1.msra.mxu0 0.0
  %411 = vmatprep.subr.mxu0 0.0
  %412 = vmatpush1.msra.mxu0 0.0
  %413 = vmatprep.subr.mxu0 0.0
  %414 = vmatpush1.msra.mxu0 0.0
  %415 = vmatprep.mubr.f32.mxu0 0.0
  %416 = vmatmul.mubr.f32.gmra.mrb[0].mxu0 %v65
  %v417 = vpop.f32.mrb[0].mxu0
  %v418 = vadd.f32 %v46, %v417
  %v419 = vpop.f32.mrb[0].mxu0
  %420 = vmatprep.mubr.f32.mxu0 0.0
  %421 = vmatmul.mubr.f32.gmra.mrb[0].mxu0 %v68
  %v422 = vpop.f32.mrb[0].mxu0
  %v423 = vadd.f32 %v51, %v422
  %v424 = vpop.f32.mrb[0].mxu0
  %425 = vmatprep.mubr.f32.mxu0 0.0
  %426 = vmatmul.mubr.f32.gmra.mrb[0].mxu0 %v71
  %v427 = vpop.f32.mrb[0].mxu0
  %v428 = vadd.f32 %v56, %v427
  %v429 = vpop.f32.mrb[0].mxu0
  %430 = vmatprep.mubr.f32.mxu0 0.0
  %431 = vmatmul.mubr.f32.gmra.mrb[0].mxu0 %v74
  %v432 = vpop.f32.mrb[0].mxu0
  %v433 = vadd.f32 %v61, %v432
  %v434 = vpop.f32.mrb[0].mxu0
  %435 = vdwg.mxu0
  %s436 = scalar_lea.vmem %s6, 32
  %437 = vst.msk [vmem:[%s436] sm:$0xff] %vm165, %v418
  %438 = vst.msk [vmem:[%s436 + $0x8] sm:$0xff] %vm165, %v423
  %439 = vst.msk [vmem:[%s436 + $0x10] sm:$0xff] %vm165, %v428
  %440 = vst.msk [vmem:[%s436 + $0x18] sm:$0xff] %vm165, %v433
  %s441 = scalar_lea.vmem %s1, 64
  %v442 = vld [vmem:[%s441] sm:$0xff]
  %v443 = vld [vmem:[%s441 + $0x8] sm:$0xff]
  %v444 = vld [vmem:[%s441 + $0x10] sm:$0xff]
  %v445 = vld [vmem:[%s441 + $0x18] sm:$0xff]
  %v446 = vld [vmem:[%s441 + $0x20] sm:$0xff]
  %v447 = vld [vmem:[%s441 + $0x28] sm:$0xff]
  %v448 = vld [vmem:[%s441 + $0x30] sm:$0xff]
  %v449 = vld [vmem:[%s441 + $0x38] sm:$0xff]
  %450 = vmatprep.subr.mxu0 0.0
  %451 = vmatpush1.msra.mxu0 %v442
  %452 = vmatprep.subr.mxu0 0.0
  %453 = vmatpush1.msra.mxu0 %v443
  %454 = vmatprep.subr.mxu0 0.0
  %455 = vmatpush1.msra.mxu0 %v444
  %456 = vmatprep.subr.mxu0 0.0
  %457 = vmatpush1.msra.mxu0 %v445
  %458 = vmatprep.subr.mxu0 0.0
  %459 = vmatpush1.msra.mxu0 %v446
  %460 = vmatprep.subr.mxu0 0.0
  %461 = vmatpush1.msra.mxu0 %v447
  %462 = vmatprep.subr.mxu0 0.0
  %463 = vmatpush1.msra.mxu0 %v448
  %464 = vmatprep.subr.mxu0 0.0
  %465 = vmatpush1.msra.mxu0 %v449
  %466 = vmatprep.subr.mxu0 0.0
  %467 = vmatpush1.msra.mxu0 0.0
  %468 = vmatprep.subr.mxu0 0.0
  %469 = vmatpush1.msra.mxu0 0.0
  %470 = vmatprep.subr.mxu0 0.0
  %471 = vmatpush1.msra.mxu0 0.0
  %472 = vmatprep.subr.mxu0 0.0
  %473 = vmatpush1.msra.mxu0 0.0
  %474 = vmatprep.subr.mxu0 0.0
  %475 = vmatpush1.msra.mxu0 0.0
  %476 = vmatprep.subr.mxu0 0.0
  %477 = vmatpush1.msra.mxu0 0.0
  %478 = vmatprep.subr.mxu0 0.0
  %479 = vmatpush1.msra.mxu0 0.0
  %480 = vmatprep.subr.mxu0 0.0
  %481 = vmatpush1.msra.mxu0 0.0
  %482 = vmatprep.subr.mxu0 0.0
  %483 = vmatpush1.msra.mxu0 0.0
  %484 = vmatprep.subr.mxu0 0.0
  %485 = vmatpush1.msra.mxu0 0.0
  %486 = vmatprep.subr.mxu0 0.0
  %487 = vmatpush1.msra.mxu0 0.0
  %488 = vmatprep.subr.mxu0 0.0
  %489 = vmatpush1.msra.mxu0 0.0
  %490 = vmatprep.subr.mxu0 0.0
  %491 = vmatpush1.msra.mxu0 0.0
  %492 = vmatprep.subr.mxu0 0.0
  %493 = vmatpush1.msra.mxu0 0.0
  %494 = vmatprep.subr.mxu0 0.0
  %495 = vmatpush1.msra.mxu0 0.0
  %496 = vmatprep.subr.mxu0 0.0
  %497 = vmatpush1.msra.mxu0 0.0
  %498 = vmatprep.subr.mxu0 0.0
  %499 = vmatpush1.msra.mxu0 0.0
  %500 = vmatprep.subr.mxu0 0.0
  %501 = vmatpush1.msra.mxu0 0.0
  %502 = vmatprep.subr.mxu0 0.0
  %503 = vmatpush1.msra.mxu0 0.0
  %504 = vmatprep.subr.mxu0 0.0
  %505 = vmatpush1.msra.mxu0 0.0
  %506 = vmatprep.subr.mxu0 0.0
  %507 = vmatpush1.msra.mxu0 0.0
  %508 = vmatprep.subr.mxu0 0.0
  %509 = vmatpush1.msra.mxu0 0.0
  %510 = vmatprep.subr.mxu0 0.0
  %511 = vmatpush1.msra.mxu0 0.0
  %512 = vmatprep.subr.mxu0 0.0
  %513 = vmatpush1.msra.mxu0 0.0
  %514 = vmatprep.mubr.f32.mxu0 0.0
  %515 = vmatmul.mubr.f32.gmra.mrb[0].mxu0 %v180
  %v516 = vpop.f32.mrb[0].mxu0
  %v517 = vadd.f32 %v37, %v516
  %v518 = vpop.f32.mrb[0].mxu0
  %519 = vmatprep.mubr.f32.mxu0 0.0
  %520 = vmatmul.mubr.f32.gmra.mrb[0].mxu0 %v183
  %v521 = vpop.f32.mrb[0].mxu0
  %v522 = vadd.f32 %v38, %v521
  %v523 = vpop.f32.mrb[0].mxu0
  %524 = vmatprep.mubr.f32.mxu0 0.0
  %525 = vmatmul.mubr.f32.gmra.mrb[0].mxu0 %v186
  %v526 = vpop.f32.mrb[0].mxu0
  %v527 = vadd.f32 %v39, %v526
  %v528 = vpop.f32.mrb[0].mxu0
  %529 = vmatprep.mubr.f32.mxu0 0.0
  %530 = vmatmul.mubr.f32.gmra.mrb[0].mxu0 %v189
  %v531 = vpop.f32.mrb[0].mxu0
  %v532 = vadd.f32 %v40, %v531
  %v533 = vpop.f32.mrb[0].mxu0
  %534 = vdwg.mxu0
  %v535 = vmax.f32 %v517, 0.0
  %v536 = vmax.f32 %v522, 0.0
  %v537 = vmax.f32 %v527, 0.0
  %v538 = vmax.f32 %v532, 0.0
  %v539 = vand.u32 2147483647, %v517
  %v540 = vand.u32 2147483647, %v522
  %v541 = vand.u32 2147483647, %v527
  %v542 = vand.u32 2147483647, %v532
  %v543 = vsub.f32 0.0, %v539
  %v544 = vsub.f32 0.0, %v540
  %v545 = vsub.f32 0.0, %v541
  %v546 = vsub.f32 0.0, %v542
  %v547 = vmul.f32 %v543, 1.442695
  %v548 = vpow.pop %v547
  %v549 = vmul.f32 %v544, 1.442695
  %v550 = vpow.pop %v549
  %v551 = vmul.f32 %v545, 1.442695
  %v552 = vpow.pop %v551
  %v553 = vmul.f32 %v546, 1.442695
  %v554 = vpow.pop %v553
  %v555 = vadd.f32 %v548, 1.0
  %v556 = vlog2.pop %v555
  %v557 = vmul.f32 %v556, 0.6931472
  %v558 = vmul.f32 -0.5, %v548
  %v559 = vadd.f32 %v558, 1.0
  %v560 = vmul.f32 %v559, %v548
  %v561 = vand.u32 2147483647, %v548
  %vm562 = vcmp.lt.f32.partialorder %v561, 0.0004427343
  %v563 = vsel %vm562, %v560, %v557
  %v564 = vadd.f32 %v550, 1.0
  %v565 = vlog2.pop %v564
  %v566 = vmul.f32 %v565, 0.6931472
  %v567 = vmul.f32 -0.5, %v550
  %v568 = vadd.f32 %v567, 1.0
  %v569 = vmul.f32 %v568, %v550
  %v570 = vand.u32 2147483647, %v550
  %vm571 = vcmp.lt.f32.partialorder %v570, 0.0004427343
  %v572 = vsel %vm571, %v569, %v566
  %v573 = vadd.f32 %v552, 1.0
  %v574 = vlog2.pop %v573
  %v575 = vmul.f32 %v574, 0.6931472
  %v576 = vmul.f32 -0.5, %v552
  %v577 = vadd.f32 %v576, 1.0
  %v578 = vmul.f32 %v577, %v552
  %v579 = vand.u32 2147483647, %v552
  %vm580 = vcmp.lt.f32.partialorder %v579, 0.0004427343
  %v581 = vsel %vm580, %v578, %v575
  %v582 = vadd.f32 %v554, 1.0
  %v583 = vlog2.pop %v582
  %v584 = vmul.f32 %v583, 0.6931472
  %v585 = vmul.f32 -0.5, %v554
  %v586 = vadd.f32 %v585, 1.0
  %v587 = vmul.f32 %v586, %v554
  %v588 = vand.u32 2147483647, %v554
  %vm589 = vcmp.lt.f32.partialorder %v588, 0.0004427343
  %v590 = vsel %vm589, %v587, %v584
  %v591 = vadd.f32 %v535, %v563
  %v592 = vadd.f32 %v536, %v572
  %v593 = vadd.f32 %v537, %v581
  %v594 = vadd.f32 %v538, %v590
  %v595 = vadd.f32 %v591, 1e-10
  %v596 = vadd.f32 %v592, 1e-10
  %v597 = vadd.f32 %v593, 1e-10
  %v598 = vadd.f32 %v594, 1e-10
  %s599 = scalar_lea.vmem %s7, 32
  %600 = vst.msk [vmem:[%s599] sm:$0xff] %vm340, %v595
  %601 = vst.msk [vmem:[%s599 + $0x8] sm:$0xff] %vm340, %v596
  %602 = vst.msk [vmem:[%s599 + $0x10] sm:$0xff] %vm340, %v597
  %603 = vst.msk [vmem:[%s599 + $0x18] sm:$0xff] %vm340, %v598
  // Predicated region
  $region26: #{tpu_custom_call.1} parent=0 // pred_check
    _
  $region27: #{tpu_custom_call.1} parent=0 // pred_check_branch
    %605 = sbr.rel (0) target = $region29
  $region28: #{tpu_custom_call.1} parent=0 // pred_region
    _
  $region29: #{tpu_custom_call.1} parent=0 // pred_fallthru
    _
  // Predicated region
  $region30: #{tpu_custom_call.1} parent=0 // pred_check
    _
  $region31: #{tpu_custom_call.1} parent=0 // pred_check_branch
    %607 = sbr.rel (0) target = $region33
  $region32: #{tpu_custom_call.1} parent=0 // pred_region
    _
  $region33: #{tpu_custom_call.1} parent=0 // pred_fallthru
    _
  // Predicated region
  $region34: #{tpu_custom_call.1} parent=0 // pred_check
    _
  $region35: #{tpu_custom_call.1} parent=0 // pred_check_branch
    %609 = sbr.rel (0) target = $region37
  $region36: #{tpu_custom_call.1} parent=0 // pred_region
    _
  $region37: #{tpu_custom_call.1} parent=0 // pred_fallthru
    _
  // Predicated region
  $region38: #{tpu_custom_call.1} parent=0 // pred_check
    _
  $region39: #{tpu_custom_call.1} parent=0 // pred_check_branch
    %611 = sbr.rel (0) target = $region41
  $region40: #{tpu_custom_call.1} parent=0 // pred_region
    _
  $region41: #{tpu_custom_call.1} parent=0 // pred_fallthru
    _

</llo_original>
